<compile_context>
chip_gen: v5e
topology: v5e:2x2
jax: 0.10.0
libtpu: 0.0.40
codegen_flags: <defaults>
</compile_context>

<pallas_src>
import functools

import jax
import jax.numpy as jnp
from jax.experimental import pallas as pl
from jax.experimental.pallas import tpu as pltpu


def _round_up(n, m):
    return pl.cdiv(n, m) * m


def _mlp_kernel(x_ref, w1_ref, b1_ref, w2_ref, b2_ref, o_ref, *, use_bf16):
    x = x_ref[...]
    w1 = w1_ref[...]
    w2 = w2_ref[...]
    if use_bf16:
        # bf16 operands, f32 accumulation (v6e/v7x MXU fast path).
        x = x.astype(jnp.bfloat16)
        w1 = w1.astype(jnp.bfloat16)
        w2 = w2.astype(jnp.bfloat16)

    # Layer 1: x @ W1 + b1, ReLU  (MXU matmul, f32 accumulate; bias/ReLU on VPU)
    h = jnp.dot(x, w1, preferred_element_type=jnp.float32)
    h = jnp.maximum(h + b1_ref[...], 0.0)          # b1 is (1, H), broadcasts over batch

    if use_bf16:
        # Explicit downcast so the second matmul feeds the MXU at packed rate.
        h = h.astype(jnp.bfloat16)

    # Layer 2: h @ W2 + b2
    out = jnp.dot(h, w2, preferred_element_type=jnp.float32)
    o_ref[...] = (out + b2_ref[...]).astype(o_ref.dtype)


@functools.partial(jax.jit, static_argnames=("block_b", "use_bf16"))
def mlp_forward(x, w1_t, b1, w2_t, b2, *, block_b=256, use_bf16=False):
    """Fused 2-layer MLP forward.

    x     : (B, D_in)  float32
    w1_t  : (D_in, H)  float32   (transposed torch weight)
    b1    : (1, H)     float32
    w2_t  : (H, D_out) float32
    b2    : (1, D_out) float32
    returns (B, D_out) float32
    """
    B, D_in = x.shape
    H = w1_t.shape[1]
    D_out = w2_t.shape[1]

    # ---- Lane-dense feature padding (zero pad -> mathematically exact) ----
    D_in_p = _round_up(D_in, 128)
    D_out_p = _round_up(D_out, 128)
    H_p = _round_up(H, 128)

    if D_in_p != D_in:
        x = jnp.pad(x, ((0, 0), (0, D_in_p - D_in)))
        w1_t = jnp.pad(w1_t, ((0, D_in_p - D_in), (0, 0)))
    if H_p != H:
        w1_t = jnp.pad(w1_t, ((0, 0), (0, H_p - H)))
        b1 = jnp.pad(b1, ((0, 0), (0, H_p - H)))
        w2_t = jnp.pad(w2_t, ((0, H_p - H), (0, 0)))
    if D_out_p != D_out:
        w2_t = jnp.pad(w2_t, ((0, 0), (0, D_out_p - D_out)))
        b2 = jnp.pad(b2, ((0, 0), (0, D_out_p - D_out)))

    # ---- Batch tiling ----
    if B <= block_b:
        # Small batch: single grid step, whole problem resident in VMEM.
        bb = B
        B_pad = B
    else:
        bb = block_b
        assert bb % 8 == 0, "block_b must be a multiple of 8 (sublane tiling)"
        B_pad = _round_up(B, bb)
        if B_pad != B:
            x = jnp.pad(x, ((0, B_pad - B), (0, 0)))

    grid = (B_pad // bb,)

    cost = pl.CostEstimate(
        flops=2 * B_pad * (D_in_p * H_p + H_p * D_out_p),
        transcendentals=0,
        bytes_accessed=4 * (B_pad * D_in_p + D_in_p * H_p + H_p * D_out_p
                            + B_pad * D_out_p + H_p + D_out_p),
    )

    out = pl.pallas_call(
        functools.partial(_mlp_kernel, use_bf16=use_bf16),
        out_shape=jax.ShapeDtypeStruct((B_pad, D_out_p), x.dtype),
        grid_spec=pltpu.PrefetchScalarGridSpec(
            num_scalar_prefetch=0,
            grid=grid,
            in_specs=[
                pl.BlockSpec((bb, D_in_p),  lambda i: (i, 0)),   # x tile per batch block
                pl.BlockSpec((D_in_p, H_p), lambda i: (0, 0)),   # full W1 resident
                pl.BlockSpec((1, H_p),      lambda i: (0, 0)),   # b1
                pl.BlockSpec((H_p, D_out_p), lambda i: (0, 0)),  # full W2 resident
                pl.BlockSpec((1, D_out_p),  lambda i: (0, 0)),   # b2
            ],
            out_specs=pl.BlockSpec((bb, D_out_p), lambda i: (i, 0)),
        ),
        compiler_params=pltpu.CompilerParams(
            dimension_semantics=("parallel",),
        ),
        cost_estimate=cost,
    )(x, w1_t, b1, w2_t, b2)

    if B_pad != B or D_out_p != D_out:
        out = out[:B, :D_out]
    return out


def init_params(key, d_in, hidden, d_out):
    """Deterministic init mimicking torch.nn.Linear (uniform +-1/sqrt(fan_in))."""
    k1, k2, k3, k4 = jax.random.split(key, 4)
    lim1 = 1.0 / (d_in ** 0.5)
    lim2 = 1.0 / (hidden ** 0.5)
    w1_t = jax.random.uniform(k1, (d_in, hidden), jnp.float32, -lim1, lim1)
    b1 = jax.random.uniform(k2, (1, hidden), jnp.float32, -lim1, lim1)
    w2_t = jax.random.uniform(k3, (hidden, d_out), jnp.float32, -lim2, lim2)
    b2 = jax.random.uniform(k4, (1, d_out), jnp.float32, -lim2, lim2)
    return w1_t, b1, w2_t, b2


def _ref(x, w1_t, b1, w2_t, b2):
    return jnp.maximum(x @ w1_t + b1, 0.0) @ w2_t + b2


if __name__ == "__main__":
    # model_type='MLP' defaults: input_dim=768, hidden=128, output_dim=1000
    # (D_out=1000 exercises the lane-padding path: 1000 -> 1024).
    D_IN, HIDDEN, D_OUT = 768, 128, 1000
    key = jax.random.PRNGKey(0)
    kx1, kx2, kp = jax.random.split(key, 3)
    w1_t, b1, w2_t, b2 = init_params(kp, D_IN, HIDDEN, D_OUT)

    # Case 1: small batch -> single-shot (grid=(1,)), f32 path.
    B1 = 16
    x1 = jax.random.normal(kx1, (B1, D_IN), jnp.float32)
    out1 = jax.block_until_ready(mlp_forward(x1, w1_t, b1, w2_t, b2))
    ref1 = _ref(x1, w1_t, b1, w2_t, b2)
    assert out1.shape == (B1, D_OUT)
    assert jnp.allclose(out1, ref1, atol=1e-4, rtol=1e-4), "f32 small-batch mismatch"

    # Case 2: batch not a multiple of the tile -> padded grid path, f32.
    B2 = 600  # pads to 768 with block_b=256, grid=(3,)
    x2 = jax.random.normal(kx2, (B2, D_IN), jnp.float32)
    out2 = jax.block_until_ready(mlp_forward(x2, w1_t, b1, w2_t, b2, block_b=256))
    ref2 = _ref(x2, w1_t, b1, w2_t, b2)
    assert out2.shape == (B2, D_OUT)
    assert jnp.allclose(out2, ref2, atol=1e-4, rtol=1e-4), "f32 tiled-batch mismatch"

    # Case 3: bf16-operand / f32-accumulate fast path (looser tolerance).
    out3 = jax.block_until_ready(
        mlp_forward(x2, w1_t, b1, w2_t, b2, block_b=256, use_bf16=True))
    assert jnp.allclose(out3, ref2, atol=5e-2, rtol=5e-2), "bf16 path mismatch"

    print("KERNEL_OK")
</pallas_src>

<mosaic_0001>
module attributes {stable_mosaic.version = 11 : i64} {
  func.func @_mlp_kernel(%arg0: i32, %arg1: memref<16x768xf32, #tpu.memory_space<vmem>>, %arg2: memref<768x128xf32, #tpu.memory_space<vmem>>, %arg3: memref<1x128xf32, #tpu.memory_space<vmem>>, %arg4: memref<128x1024xf32, #tpu.memory_space<vmem>>, %arg5: memref<1x1024xf32, #tpu.memory_space<vmem>>, %arg6: memref<16x1024xf32, #tpu.memory_space<vmem>>) attributes {dimension_semantics = [#tpu.dimension_semantics<parallel>], iteration_bounds = array<i64: 1>, scalar_prefetch = 0 : i64, scratch_operands = 0 : i64, tpu.core_type = #tpu.core_type<tc>, window_params = [{transform_indices = @transform_0, window_bounds = array<i64: 16, 768>}, {pipeline_mode = #tpu.pipeline_mode<synchronous>, transform_indices = @transform_1, window_bounds = array<i64: 768, 128>}, {pipeline_mode = #tpu.pipeline_mode<synchronous>, transform_indices = @transform_2, window_bounds = array<i64: 1, 128>}, {pipeline_mode = #tpu.pipeline_mode<synchronous>, transform_indices = @transform_3, window_bounds = array<i64: 128, 1024>}, {pipeline_mode = #tpu.pipeline_mode<synchronous>, transform_indices = @transform_4, window_bounds = array<i64: 1, 1024>}, {transform_indices = @transform_5, window_bounds = array<i64: 16, 1024>}]} {
    %c0 = arith.constant 0 : index
    %c0_0 = arith.constant 0 : index
    %0 = vector.load %arg1[%c0, %c0_0] : memref<16x768xf32, #tpu.memory_space<vmem>>, vector<16x768xf32>
    %c0_1 = arith.constant 0 : index
    %c0_2 = arith.constant 0 : index
    %1 = vector.load %arg2[%c0_1, %c0_2] : memref<768x128xf32, #tpu.memory_space<vmem>>, vector<768x128xf32>
    %c0_3 = arith.constant 0 : index
    %c0_4 = arith.constant 0 : index
    %2 = vector.load %arg4[%c0_3, %c0_4] : memref<128x1024xf32, #tpu.memory_space<vmem>>, vector<128x1024xf32>
    %cst = arith.constant dense<0.000000e+00> : vector<16x128xf32>
    %3 = tpu.matmul %0, %1, %cst {dimension_numbers = #tpu.dot_dimension_numbers<[1], [0], [0], [1], [0, 0, 1, 1], [], []>} : vector<16x768xf32>, vector<768x128xf32>, vector<16x128xf32> -> vector<16x128xf32>
    %c0_5 = arith.constant 0 : index
    %c0_6 = arith.constant 0 : index
    %4 = vector.load %arg3[%c0_5, %c0_6] : memref<1x128xf32, #tpu.memory_space<vmem>>, vector<1x128xf32>
    %5 = vector.broadcast %4 : vector<1x128xf32> to vector<16x128xf32>
    %6 = arith.addf %3, %5 : vector<16x128xf32>
    %cst_7 = arith.constant 0.000000e+00 : f32
    %7 = vector.broadcast %cst_7 : f32 to vector<16x128xf32>
    %8 = arith.maximumf %6, %7 : vector<16x128xf32>
    %cst_8 = arith.constant dense<0.000000e+00> : vector<16x1024xf32>
    %9 = tpu.matmul %8, %2, %cst_8 {dimension_numbers = #tpu.dot_dimension_numbers<[1], [0], [0], [1], [0, 0, 1, 1], [], []>} : vector<16x128xf32>, vector<128x1024xf32>, vector<16x1024xf32> -> vector<16x1024xf32>
    %c0_9 = arith.constant 0 : index
    %c0_10 = arith.constant 0 : index
    %10 = vector.load %arg5[%c0_9, %c0_10] : memref<1x1024xf32, #tpu.memory_space<vmem>>, vector<1x1024xf32>
    %11 = vector.broadcast %10 : vector<1x1024xf32> to vector<16x1024xf32>
    %12 = arith.addf %9, %11 : vector<16x1024xf32>
    %c0_11 = arith.constant 0 : index
    %c0_12 = arith.constant 0 : index
    %13 = vector.load %arg6[%c0_11, %c0_12] : memref<16x1024xf32, #tpu.memory_space<vmem>>, vector<16x1024xf32>
    tpu.vector_store %arg6[%c0_11, %c0_12], %12 {strides = array<i32>} : memref<16x1024xf32, #tpu.memory_space<vmem>>, vector<16x1024xf32>,
    return
  }
  func.func @transform_0(%arg0: i32) -> (i32, i32) {
    %c0_i32 = arith.constant 0 : i32
    %c0_i32_0 = arith.constant 0 : i32
    return %arg0, %c0_i32 : i32, i32
  }
  func.func @transform_1(%arg0: i32) -> (i32, i32) {
    %c0_i32 = arith.constant 0 : i32
    %c0_i32_0 = arith.constant 0 : i32
    %c0_i32_1 = arith.constant 0 : i32
    return %c0_i32, %c0_i32_0 : i32, i32
  }
  func.func @transform_2(%arg0: i32) -> (i32, i32) {
    %c0_i32 = arith.constant 0 : i32
    %c0_i32_0 = arith.constant 0 : i32
    %c0_i32_1 = arith.constant 0 : i32
    return %c0_i32, %c0_i32_0 : i32, i32
  }
  func.func @transform_3(%arg0: i32) -> (i32, i32) {
    %c0_i32 = arith.constant 0 : i32
    %c0_i32_0 = arith.constant 0 : i32
    %c0_i32_1 = arith.constant 0 : i32
    return %c0_i32, %c0_i32_0 : i32, i32
  }
  func.func @transform_4(%arg0: i32) -> (i32, i32) {
    %c0_i32 = arith.constant 0 : i32
    %c0_i32_0 = arith.constant 0 : i32
    %c0_i32_1 = arith.constant 0 : i32
    return %c0_i32, %c0_i32_0 : i32, i32
  }
  func.func @transform_5(%arg0: i32) -> (i32, i32) {
    %c0_i32 = arith.constant 0 : i32
    %c0_i32_0 = arith.constant 0 : i32
    return %arg0, %c0_i32 : i32, i32
  }
}

</mosaic_0001>

<llo_original>
// kernel: mlp_forward.1
$region0: #{mlp_forward.1}
  #allocation0 [shape = 'u32[]', space=smem, size = 0x4, offset = 0x4, fixed_abs, tag = 'smem constant byte address 0x4 - core index']
  #allocation1 [shape = 'u32[72,128]{1,0:T(1,128)}', space=vmem, size = 0x9000, scoped, tag = 'internal scratch']
  %s0 = inlined_call_operand.vmem [shape: f32[16,768], index: 0, kind: input, shape index: {}]
  %s1 = inlined_call_operand.vmem [shape: f32[768,128], index: 1, kind: input, shape index: {}]
  %s2 = inlined_call_operand.vmem [shape: f32[1,128], index: 2, kind: input, shape index: {}]
  %s3 = inlined_call_operand.vmem [shape: f32[128,1024], index: 3, kind: input, shape index: {}]
  %s4 = inlined_call_operand.vmem [shape: f32[1,1024], index: 4, kind: input, shape index: {}]
  %s5 = inlined_call_operand.hbm [shape: f32[16,1024], index: 5, kind: output, shape index: {}]
  %s6 = sld [smem:[#allocation0]]
  $region30: #{mlp_forward.1} parent=0
    _
  %s8 = ssub.s32 1, %s6
  %s9 = scalar_select 0, %s8, %s6
  $region1: #{mlp_forward.1} parent=0
    #allocation2 [shape = 'u8[65536]{0}', space=vmem, size = 0x10000, scoped, tag = 'output window, operand 0, single buffered']
    #allocation3 [shape = 's32[1]{0}', space=sflag, size = 0x4, scoped, tag = 'scoped memory for mlp_forward.1']
    %10 = vsyncpa [#allocation3], 0
    // Predicated region
    $region2: #{mlp_forward.1} parent=1 // pred_check
      _
    $region3: #{mlp_forward.1} parent=1 // pred_check_branch
      %12 = sbr.rel (0) target = $region5
    $region4: #{mlp_forward.1} parent=1 // pred_region
      _
    $region5: #{mlp_forward.1} parent=1 // pred_fallthru
      _
    // Predicated region
    $region6: #{mlp_forward.1} parent=1 // pred_check
      _
    $region7: #{mlp_forward.1} parent=1 // pred_check_branch
      %14 = sbr.rel (0) target = $region9
    $region8: #{mlp_forward.1} parent=1 // pred_region
      _
    $region9: #{mlp_forward.1} parent=1 // pred_fallthru
      _
    // Predicated region
    $region10: #{mlp_forward.1} parent=1 // pred_check
      _
    $region11: #{mlp_forward.1} parent=1 // pred_check_branch
      %16 = sbr.rel (0) target = $region13
    $region12: #{mlp_forward.1} parent=1 // pred_region
      _
    $region13: #{mlp_forward.1} parent=1 // pred_fallthru
      _
    // Predicated region
    $region14: #{mlp_forward.1} parent=1 // pred_check
      _
    $region15: #{mlp_forward.1} parent=1 // pred_check_branch
      %18 = sbr.rel (0) target = $region17
    $region16: #{mlp_forward.1} parent=1 // pred_region
      _
    $region17: #{mlp_forward.1} parent=1 // pred_fallthru
      _
    // Predicated region
    $region18: #{mlp_forward.1} parent=1 // pred_check
      _
    $region19: #{mlp_forward.1} parent=1 // pred_check_branch
      %20 = sbr.rel (0) target = $region21
    $region20: #{mlp_forward.1} parent=1 // pred_region
      _
    $region21: #{mlp_forward.1} parent=1 // pred_fallthru
      _
    %v21 = vld [vmem:[%s0] sm:$0xff]
    %v22 = vld [vmem:[%s0 + $0x8] sm:$0xff]
    %v23 = vld [vmem:[%s0 + $0x10] sm:$0xff]
    %v24 = vld [vmem:[%s0 + $0x18] sm:$0xff]
    %v25 = vld [vmem:[%s0 + $0x20] sm:$0xff]
    %v26 = vld [vmem:[%s0 + $0x28] sm:$0xff]
    %v27 = vld [vmem:[%s0 + $0x30] sm:$0xff]
    %v28 = vld [vmem:[%s0 + $0x38] sm:$0xff]
    %v29 = vld [vmem:[%s0 + $0x40] sm:$0xff]
    %v30 = vld [vmem:[%s0 + $0x48] sm:$0xff]
    %v31 = vld [vmem:[%s0 + $0x50] sm:$0xff]
    %v32 = vld [vmem:[%s0 + $0x58] sm:$0xff]
    %v33 = vld [vmem:[%s1] sm:$0xff]
    %v34 = vld [vmem:[%s1 + $0x8] sm:$0xff]
    %v35 = vld [vmem:[%s1 + $0x10] sm:$0xff]
    %v36 = vld [vmem:[%s1 + $0x18] sm:$0xff]
    %v37 = vld [vmem:[%s1 + $0x20] sm:$0xff]
    %v38 = vld [vmem:[%s1 + $0x28] sm:$0xff]
    %v39 = vld [vmem:[%s1 + $0x30] sm:$0xff]
    %v40 = vld [vmem:[%s1 + $0x38] sm:$0xff]
    %v41 = vld [vmem:[%s1 + $0x40] sm:$0xff]
    %v42 = vld [vmem:[%s1 + $0x48] sm:$0xff]
    %v43 = vld [vmem:[%s1 + $0x50] sm:$0xff]
    %v44 = vld [vmem:[%s1 + $0x58] sm:$0xff]
    %v45 = vld [vmem:[%s1 + $0x60] sm:$0xff]
    %v46 = vld [vmem:[%s1 + $0x68] sm:$0xff]
    %v47 = vld [vmem:[%s1 + $0x70] sm:$0xff]
    %v48 = vld [vmem:[%s1 + $0x78] sm:$0xff]
    %v49 = vld [vmem:[%s1 + $0x80] sm:$0xff]
    %v50 = vld [vmem:[%s1 + $0x88] sm:$0xff]
    %v51 = vld [vmem:[%s1 + $0x90] sm:$0xff]
    %v52 = vld [vmem:[%s1 + $0x98] sm:$0xff]
    %v53 = vld [vmem:[%s1 + $0xa0] sm:$0xff]
    %v54 = vld [vmem:[%s1 + $0xa8] sm:$0xff]
    %v55 = vld [vmem:[%s1 + $0xb0] sm:$0xff]
    %v56 = vld [vmem:[%s1 + $0xb8] sm:$0xff]
    %v57 = vld [vmem:[%s1 + $0xc0] sm:$0xff]
    %v58 = vld [vmem:[%s1 + $0xc8] sm:$0xff]
    %v59 = vld [vmem:[%s1 + $0xd0] sm:$0xff]
    %v60 = vld [vmem:[%s1 + $0xd8] sm:$0xff]
    %v61 = vld [vmem:[%s1 + $0xe0] sm:$0xff]
    %v62 = vld [vmem:[%s1 + $0xe8] sm:$0xff]
    %v63 = vld [vmem:[%s1 + $0xf0] sm:$0xff]
    %v64 = vld [vmem:[%s1 + $0xf8] sm:$0xff]
    %v65 = vld [vmem:[%s1 + $0x100] sm:$0xff]
    %v66 = vld [vmem:[%s1 + $0x108] sm:$0xff]
    %v67 = vld [vmem:[%s1 + $0x110] sm:$0xff]
    %v68 = vld [vmem:[%s1 + $0x118] sm:$0xff]
    %v69 = vld [vmem:[%s1 + $0x120] sm:$0xff]
    %v70 = vld [vmem:[%s1 + $0x128] sm:$0xff]
    %v71 = vld [vmem:[%s1 + $0x130] sm:$0xff]
    %v72 = vld [vmem:[%s1 + $0x138] sm:$0xff]
    %v73 = vld [vmem:[%s1 + $0x140] sm:$0xff]
    %v74 = vld [vmem:[%s1 + $0x148] sm:$0xff]
    %v75 = vld [vmem:[%s1 + $0x150] sm:$0xff]
    %v76 = vld [vmem:[%s1 + $0x158] sm:$0xff]
    %v77 = vld [vmem:[%s1 + $0x160] sm:$0xff]
    %v78 = vld [vmem:[%s1 + $0x168] sm:$0xff]
    %v79 = vld [vmem:[%s1 + $0x170] sm:$0xff]
    %v80 = vld [vmem:[%s1 + $0x178] sm:$0xff]
    %v81 = vld [vmem:[%s1 + $0x180] sm:$0xff]
    %v82 = vld [vmem:[%s1 + $0x188] sm:$0xff]
    %v83 = vld [vmem:[%s1 + $0x190] sm:$0xff]
    %v84 = vld [vmem:[%s1 + $0x198] sm:$0xff]
    %v85 = vld [vmem:[%s1 + $0x1a0] sm:$0xff]
    %v86 = vld [vmem:[%s1 + $0x1a8] sm:$0xff]
    %v87 = vld [vmem:[%s1 + $0x1b0] sm:$0xff]
    %v88 = vld [vmem:[%s1 + $0x1b8] sm:$0xff]
    %v89 = vld [vmem:[%s1 + $0x1c0] sm:$0xff]
    %v90 = vld [vmem:[%s1 + $0x1c8] sm:$0xff]
    %v91 = vld [vmem:[%s1 + $0x1d0] sm:$0xff]
    %v92 = vld [vmem:[%s1 + $0x1d8] sm:$0xff]
    %v93 = vld [vmem:[%s1 + $0x1e0] sm:$0xff]
    %v94 = vld [vmem:[%s1 + $0x1e8] sm:$0xff]
    %v95 = vld [vmem:[%s1 + $0x1f0] sm:$0xff]
    %v96 = vld [vmem:[%s1 + $0x1f8] sm:$0xff]
    %v97 = vld [vmem:[%s1 + $0x200] sm:$0xff]
    %v98 = vld [vmem:[%s1 + $0x208] sm:$0xff]
    %v99 = vld [vmem:[%s1 + $0x210] sm:$0xff]
    %v100 = vld [vmem:[%s1 + $0x218] sm:$0xff]
    %v101 = vld [vmem:[%s1 + $0x220] sm:$0xff]
    %v102 = vld [vmem:[%s1 + $0x228] sm:$0xff]
    %v103 = vld [vmem:[%s1 + $0x230] sm:$0xff]
    %v104 = vld [vmem:[%s1 + $0x238] sm:$0xff]
    %v105 = vld [vmem:[%s1 + $0x240] sm:$0xff]
    %v106 = vld [vmem:[%s1 + $0x248] sm:$0xff]
    %v107 = vld [vmem:[%s1 + $0x250] sm:$0xff]
    %v108 = vld [vmem:[%s1 + $0x258] sm:$0xff]
    %v109 = vld [vmem:[%s1 + $0x260] sm:$0xff]
    %v110 = vld [vmem:[%s1 + $0x268] sm:$0xff]
    %v111 = vld [vmem:[%s1 + $0x270] sm:$0xff]
    %v112 = vld [vmem:[%s1 + $0x278] sm:$0xff]
    %v113 = vld [vmem:[%s1 + $0x280] sm:$0xff]
    %v114 = vld [vmem:[%s1 + $0x288] sm:$0xff]
    %v115 = vld [vmem:[%s1 + $0x290] sm:$0xff]
    %v116 = vld [vmem:[%s1 + $0x298] sm:$0xff]
    %v117 = vld [vmem:[%s1 + $0x2a0] sm:$0xff]
    %v118 = vld [vmem:[%s1 + $0x2a8] sm:$0xff]
    %v119 = vld [vmem:[%s1 + $0x2b0] sm:$0xff]
    %v120 = vld [vmem:[%s1 + $0x2b8] sm:$0xff]
    %v121 = vld [vmem:[%s1 + $0x2c0] sm:$0xff]
    %v122 = vld [vmem:[%s1 + $0x2c8] sm:$0xff]
    %v123 = vld [vmem:[%s1 + $0x2d0] sm:$0xff]
    %v124 = vld [vmem:[%s1 + $0x2d8] sm:$0xff]
    %v125 = vld [vmem:[%s1 + $0x2e0] sm:$0xff]
    %v126 = vld [vmem:[%s1 + $0x2e8] sm:$0xff]
    %v127 = vld [vmem:[%s1 + $0x2f0] sm:$0xff]
    %v128 = vld [vmem:[%s1 + $0x2f8] sm:$0xff]
    %v129 = vld [vmem:[%s3] sm:$0xff]
    %v130 = vld [vmem:[%s3 + $0x8] sm:$0xff]
    %v131 = vld [vmem:[%s3 + $0x10] sm:$0xff]
    %v132 = vld [vmem:[%s3 + $0x18] sm:$0xff]
    %v133 = vld [vmem:[%s3 + $0x20] sm:$0xff]
    %v134 = vld [vmem:[%s3 + $0x28] sm:$0xff]
    %v135 = vld [vmem:[%s3 + $0x30] sm:$0xff]
    %v136 = vld [vmem:[%s3 + $0x38] sm:$0xff]
    %v137 = vld [vmem:[%s3 + $0x40] sm:$0xff]
    %v138 = vld [vmem:[%s3 + $0x48] sm:$0xff]
    %v139 = vld [vmem:[%s3 + $0x50] sm:$0xff]
    %v140 = vld [vmem:[%s3 + $0x58] sm:$0xff]
    %v141 = vld [vmem:[%s3 + $0x60] sm:$0xff]
    %v142 = vld [vmem:[%s3 + $0x68] sm:$0xff]
    %v143 = vld [vmem:[%s3 + $0x70] sm:$0xff]
    %v144 = vld [vmem:[%s3 + $0x78] sm:$0xff]
    %v145 = vld [vmem:[%s3 + $0x80] sm:$0xff]
    %v146 = vld [vmem:[%s3 + $0x88] sm:$0xff]
    %v147 = vld [vmem:[%s3 + $0x90] sm:$0xff]
    %v148 = vld [vmem:[%s3 + $0x98] sm:$0xff]
    %v149 = vld [vmem:[%s3 + $0xa0] sm:$0xff]
    %v150 = vld [vmem:[%s3 + $0xa8] sm:$0xff]
    %v151 = vld [vmem:[%s3 + $0xb0] sm:$0xff]
    %v152 = vld [vmem:[%s3 + $0xb8] sm:$0xff]
    %v153 = vld [vmem:[%s3 + $0xc0] sm:$0xff]
    %v154 = vld [vmem:[%s3 + $0xc8] sm:$0xff]
    %v155 = vld [vmem:[%s3 + $0xd0] sm:$0xff]
    %v156 = vld [vmem:[%s3 + $0xd8] sm:$0xff]
    %v157 = vld [vmem:[%s3 + $0xe0] sm:$0xff]
    %v158 = vld [vmem:[%s3 + $0xe8] sm:$0xff]
    %v159 = vld [vmem:[%s3 + $0xf0] sm:$0xff]
    %v160 = vld [vmem:[%s3 + $0xf8] sm:$0xff]
    %v161 = vld [vmem:[%s3 + $0x100] sm:$0xff]
    %v162 = vld [vmem:[%s3 + $0x108] sm:$0xff]
    %v163 = vld [vmem:[%s3 + $0x110] sm:$0xff]
    %v164 = vld [vmem:[%s3 + $0x118] sm:$0xff]
    %v165 = vld [vmem:[%s3 + $0x120] sm:$0xff]
    %v166 = vld [vmem:[%s3 + $0x128] sm:$0xff]
    %v167 = vld [vmem:[%s3 + $0x130] sm:$0xff]
    %v168 = vld [vmem:[%s3 + $0x138] sm:$0xff]
    %v169 = vld [vmem:[%s3 + $0x140] sm:$0xff]
    %v170 = vld [vmem:[%s3 + $0x148] sm:$0xff]
    %v171 = vld [vmem:[%s3 + $0x150] sm:$0xff]
    %v172 = vld [vmem:[%s3 + $0x158] sm:$0xff]
    %v173 = vld [vmem:[%s3 + $0x160] sm:$0xff]
    %v174 = vld [vmem:[%s3 + $0x168] sm:$0xff]
    %v175 = vld [vmem:[%s3 + $0x170] sm:$0xff]
    %v176 = vld [vmem:[%s3 + $0x178] sm:$0xff]
    %v177 = vld [vmem:[%s3 + $0x180] sm:$0xff]
    %v178 = vld [vmem:[%s3 + $0x188] sm:$0xff]
    %v179 = vld [vmem:[%s3 + $0x190] sm:$0xff]
    %v180 = vld [vmem:[%s3 + $0x198] sm:$0xff]
    %v181 = vld [vmem:[%s3 + $0x1a0] sm:$0xff]
    %v182 = vld [vmem:[%s3 + $0x1a8] sm:$0xff]
    %v183 = vld [vmem:[%s3 + $0x1b0] sm:$0xff]
    %v184 = vld [vmem:[%s3 + $0x1b8] sm:$0xff]
    %v185 = vld [vmem:[%s3 + $0x1c0] sm:$0xff]
    %v186 = vld [vmem:[%s3 + $0x1c8] sm:$0xff]
    %v187 = vld [vmem:[%s3 + $0x1d0] sm:$0xff]
    %v188 = vld [vmem:[%s3 + $0x1d8] sm:$0xff]
    %v189 = vld [vmem:[%s3 + $0x1e0] sm:$0xff]
    %v190 = vld [vmem:[%s3 + $0x1e8] sm:$0xff]
    %v191 = vld [vmem:[%s3 + $0x1f0] sm:$0xff]
    %v192 = vld [vmem:[%s3 + $0x1f8] sm:$0xff]
    %v193 = vld [vmem:[%s3 + $0x200] sm:$0xff]
    %v194 = vld [vmem:[%s3 + $0x208] sm:$0xff]
    %v195 = vld [vmem:[%s3 + $0x210] sm:$0xff]
    %v196 = vld [vmem:[%s3 + $0x218] sm:$0xff]
    %v197 = vld [vmem:[%s3 + $0x220] sm:$0xff]
    %v198 = vld [vmem:[%s3 + $0x228] sm:$0xff]
    %v199 = vld [vmem:[%s3 + $0x230] sm:$0xff]
    %v200 = vld [vmem:[%s3 + $0x238] sm:$0xff]
    %v201 = vld [vmem:[%s3 + $0x240] sm:$0xff]
    %v202 = vld [vmem:[%s3 + $0x248] sm:$0xff]
    %v203 = vld [vmem:[%s3 + $0x250] sm:$0xff]
    %v204 = vld [vmem:[%s3 + $0x258] sm:$0xff]
    %v205 = vld [vmem:[%s3 + $0x260] sm:$0xff]
    %v206 = vld [vmem:[%s3 + $0x268] sm:$0xff]
    %v207 = vld [vmem:[%s3 + $0x270] sm:$0xff]
    %v208 = vld [vmem:[%s3 + $0x278] sm:$0xff]
    %v209 = vld [vmem:[%s3 + $0x280] sm:$0xff]
    %v210 = vld [vmem:[%s3 + $0x288] sm:$0xff]
    %v211 = vld [vmem:[%s3 + $0x290] sm:$0xff]
    %v212 = vld [vmem:[%s3 + $0x298] sm:$0xff]
    %v213 = vld [vmem:[%s3 + $0x2a0] sm:$0xff]
    %v214 = vld [vmem:[%s3 + $0x2a8] sm:$0xff]
    %v215 = vld [vmem:[%s3 + $0x2b0] sm:$0xff]
    %v216 = vld [vmem:[%s3 + $0x2b8] sm:$0xff]
    %v217 = vld [vmem:[%s3 + $0x2c0] sm:$0xff]
    %v218 = vld [vmem:[%s3 + $0x2c8] sm:$0xff]
    %v219 = vld [vmem:[%s3 + $0x2d0] sm:$0xff]
    %v220 = vld [vmem:[%s3 + $0x2d8] sm:$0xff]
    %v221 = vld [vmem:[%s3 + $0x2e0] sm:$0xff]
    %v222 = vld [vmem:[%s3 + $0x2e8] sm:$0xff]
    %v223 = vld [vmem:[%s3 + $0x2f0] sm:$0xff]
    %v224 = vld [vmem:[%s3 + $0x2f8] sm:$0xff]
    %v225 = vld [vmem:[%s3 + $0x300] sm:$0xff]
    %v226 = vld [vmem:[%s3 + $0x308] sm:$0xff]
    %v227 = vld [vmem:[%s3 + $0x310] sm:$0xff]
    %v228 = vld [vmem:[%s3 + $0x318] sm:$0xff]
    %v229 = vld [vmem:[%s3 + $0x320] sm:$0xff]
    %v230 = vld [vmem:[%s3 + $0x328] sm:$0xff]
    %v231 = vld [vmem:[%s3 + $0x330] sm:$0xff]
    %v232 = vld [vmem:[%s3 + $0x338] sm:$0xff]
    %v233 = vld [vmem:[%s3 + $0x340] sm:$0xff]
    %v234 = vld [vmem:[%s3 + $0x348] sm:$0xff]
    %v235 = vld [vmem:[%s3 + $0x350] sm:$0xff]
    %v236 = vld [vmem:[%s3 + $0x358] sm:$0xff]
    %v237 = vld [vmem:[%s3 + $0x360] sm:$0xff]
    %v238 = vld [vmem:[%s3 + $0x368] sm:$0xff]
    %v239 = vld [vmem:[%s3 + $0x370] sm:$0xff]
    %v240 = vld [vmem:[%s3 + $0x378] sm:$0xff]
    %v241 = vld [vmem:[%s3 + $0x380] sm:$0xff]
    %v242 = vld [vmem:[%s3 + $0x388] sm:$0xff]
    %v243 = vld [vmem:[%s3 + $0x390] sm:$0xff]
    %v244 = vld [vmem:[%s3 + $0x398] sm:$0xff]
    %v245 = vld [vmem:[%s3 + $0x3a0] sm:$0xff]
    %v246 = vld [vmem:[%s3 + $0x3a8] sm:$0xff]
    %v247 = vld [vmem:[%s3 + $0x3b0] sm:$0xff]
    %v248 = vld [vmem:[%s3 + $0x3b8] sm:$0xff]
    %v249 = vld [vmem:[%s3 + $0x3c0] sm:$0xff]
    %v250 = vld [vmem:[%s3 + $0x3c8] sm:$0xff]
    %v251 = vld [vmem:[%s3 + $0x3d0] sm:$0xff]
    %v252 = vld [vmem:[%s3 + $0x3d8] sm:$0xff]
    %v253 = vld [vmem:[%s3 + $0x3e0] sm:$0xff]
    %v254 = vld [vmem:[%s3 + $0x3e8] sm:$0xff]
    %v255 = vld [vmem:[%s3 + $0x3f0] sm:$0xff]
    %v256 = vld [vmem:[%s3 + $0x3f8] sm:$0xff]
    %v257 = vld [vmem:[%s2] sm:$0x1]
    %v259 = vperm.slane %v257, 0
    %261 = vmatpush.msra.mxu0 %v48
    %262 = vmatpush.msra.mxu0 %v47
    %263 = vmatpush.msra.mxu0 %v46
    %264 = vmatpush.msra.mxu0 %v45
    %265 = vmatpush.msra.mxu0 %v44
    %266 = vmatpush.msra.mxu0 %v43
    %267 = vmatpush.msra.mxu0 %v42
    %268 = vmatpush.msra.mxu0 %v41
    %269 = vmatpush.msra.mxu0 %v40
    %270 = vmatpush.msra.mxu0 %v39
    %271 = vmatpush.msra.mxu0 %v38
    %272 = vmatpush.msra.mxu0 %v37
    %273 = vmatpush.msra.mxu0 %v36
    %274 = vmatpush.msra.mxu0 %v35
    %275 = vmatpush.msra.mxu0 %v34
    %276 = vmatpush.msra.mxu0 %v33
    %277 = vmatmul.f32.gmra.mxu0 %v21
    %v278 = vpop.f32.mrf.mxu0
    %v279 = vadd.f32 %v259, %v278
    %280 = vmatmul.f32.gmra.mxu0 %v27
    %v281 = vpop.f32.mrf.mxu0
    %v282 = vadd.f32 %v259, %v281
    %283 = vdwg.mxu0
    %284 = vmatpush.msra.mxu0 %v64
    %285 = vmatpush.msra.mxu0 %v63
    %286 = vmatpush.msra.mxu0 %v62
    %287 = vmatpush.msra.mxu0 %v61
    %288 = vmatpush.msra.mxu0 %v60
    %289 = vmatpush.msra.mxu0 %v59
    %290 = vmatpush.msra.mxu0 %v58
    %291 = vmatpush.msra.mxu0 %v57
    %292 = vmatpush.msra.mxu0 %v56
    %293 = vmatpush.msra.mxu0 %v55
    %294 = vmatpush.msra.mxu0 %v54
    %295 = vmatpush.msra.mxu0 %v53
    %296 = vmatpush.msra.mxu0 %v52
    %297 = vmatpush.msra.mxu0 %v51
    %298 = vmatpush.msra.mxu0 %v50
    %299 = vmatpush.msra.mxu0 %v49
    %300 = vmatmul.f32.gmra.mxu0 %v22
    %v301 = vpop.f32.mrf.mxu0
    %v302 = vadd.f32 %v279, %v301
    %303 = vmatmul.f32.gmra.mxu0 %v28
    %v304 = vpop.f32.mrf.mxu0
    %v305 = vadd.f32 %v282, %v304
    %306 = vdwg.mxu0
    %307 = vmatpush.msra.mxu0 %v80
    %308 = vmatpush.msra.mxu0 %v79
    %309 = vmatpush.msra.mxu0 %v78
    %310 = vmatpush.msra.mxu0 %v77
    %311 = vmatpush.msra.mxu0 %v76
    %312 = vmatpush.msra.mxu0 %v75
    %313 = vmatpush.msra.mxu0 %v74
    %314 = vmatpush.msra.mxu0 %v73
    %315 = vmatpush.msra.mxu0 %v72
    %316 = vmatpush.msra.mxu0 %v71
    %317 = vmatpush.msra.mxu0 %v70
    %318 = vmatpush.msra.mxu0 %v69
    %319 = vmatpush.msra.mxu0 %v68
    %320 = vmatpush.msra.mxu0 %v67
    %321 = vmatpush.msra.mxu0 %v66
    %322 = vmatpush.msra.mxu0 %v65
    %323 = vmatmul.f32.gmra.mxu0 %v23
    %v324 = vpop.f32.mrf.mxu0
    %v325 = vadd.f32 %v302, %v324
    %326 = vmatmul.f32.gmra.mxu0 %v29
    %v327 = vpop.f32.mrf.mxu0
    %v328 = vadd.f32 %v305, %v327
    %329 = vdwg.mxu0
    %330 = vmatpush.msra.mxu0 %v96
    %331 = vmatpush.msra.mxu0 %v95
    %332 = vmatpush.msra.mxu0 %v94
    %333 = vmatpush.msra.mxu0 %v93
    %334 = vmatpush.msra.mxu0 %v92
    %335 = vmatpush.msra.mxu0 %v91
    %336 = vmatpush.msra.mxu0 %v90
    %337 = vmatpush.msra.mxu0 %v89
    %338 = vmatpush.msra.mxu0 %v88
    %339 = vmatpush.msra.mxu0 %v87
    %340 = vmatpush.msra.mxu0 %v86
    %341 = vmatpush.msra.mxu0 %v85
    %342 = vmatpush.msra.mxu0 %v84
    %343 = vmatpush.msra.mxu0 %v83
    %344 = vmatpush.msra.mxu0 %v82
    %345 = vmatpush.msra.mxu0 %v81
    %346 = vmatmul.f32.gmra.mxu0 %v24
    %v347 = vpop.f32.mrf.mxu0
    %v348 = vadd.f32 %v325, %v347
    %349 = vmatmul.f32.gmra.mxu0 %v30
    %v350 = vpop.f32.mrf.mxu0
    %v351 = vadd.f32 %v328, %v350
    %352 = vdwg.mxu0
    %353 = vmatpush.msra.mxu0 %v112
    %354 = vmatpush.msra.mxu0 %v111
    %355 = vmatpush.msra.mxu0 %v110
    %356 = vmatpush.msra.mxu0 %v109
    %357 = vmatpush.msra.mxu0 %v108
    %358 = vmatpush.msra.mxu0 %v107
    %359 = vmatpush.msra.mxu0 %v106
    %360 = vmatpush.msra.mxu0 %v105
    %361 = vmatpush.msra.mxu0 %v104
    %362 = vmatpush.msra.mxu0 %v103
    %363 = vmatpush.msra.mxu0 %v102
    %364 = vmatpush.msra.mxu0 %v101
    %365 = vmatpush.msra.mxu0 %v100
    %366 = vmatpush.msra.mxu0 %v99
    %367 = vmatpush.msra.mxu0 %v98
    %368 = vmatpush.msra.mxu0 %v97
    %369 = vmatmul.f32.gmra.mxu0 %v25
    %v370 = vpop.f32.mrf.mxu0
    %v371 = vadd.f32 %v348, %v370
    %372 = vmatmul.f32.gmra.mxu0 %v31
    %v373 = vpop.f32.mrf.mxu0
    %v374 = vadd.f32 %v351, %v373
    %375 = vdwg.mxu0
    %376 = vmatpush.msra.mxu0 %v128
    %377 = vmatpush.msra.mxu0 %v127
    %378 = vmatpush.msra.mxu0 %v126
    %379 = vmatpush.msra.mxu0 %v125
    %380 = vmatpush.msra.mxu0 %v124
    %381 = vmatpush.msra.mxu0 %v123
    %382 = vmatpush.msra.mxu0 %v122
    %383 = vmatpush.msra.mxu0 %v121
    %384 = vmatpush.msra.mxu0 %v120
    %385 = vmatpush.msra.mxu0 %v119
    %386 = vmatpush.msra.mxu0 %v118
    %387 = vmatpush.msra.mxu0 %v117
    %388 = vmatpush.msra.mxu0 %v116
    %389 = vmatpush.msra.mxu0 %v115
    %390 = vmatpush.msra.mxu0 %v114
    %391 = vmatpush.msra.mxu0 %v113
    %392 = vmatmul.f32.gmra.mxu0 %v26
    %v393 = vpop.f32.mrf.mxu0
    %v394 = vadd.f32 %v371, %v393
    %395 = vmatmul.f32.gmra.mxu0 %v32
    %v396 = vpop.f32.mrf.mxu0
    %v397 = vadd.f32 %v374, %v396
    %398 = vdwg.mxu0
    %v399 = vmax.f32 %v394, 0.0
    %v400 = vmax.f32 %v397, 0.0
    %v401 = vld [vmem:[%s4] sm:$0xff]
    %v403 = vperm.slane %v401, 0
    %v404 = vperm.slane %v401, 1
    %v405 = vperm.slane %v401, 2
    %v406 = vperm.slane %v401, 3
    %v407 = vperm.slane %v401, 4
    %v408 = vperm.slane %v401, 5
    %v409 = vperm.slane %v401, 6
    %v410 = vperm.slane %v401, 7
    %419 = vmatpush.msra.mxu0 %v249
    %420 = vmatpush.msra.mxu0 %v241
    %421 = vmatpush.msra.mxu0 %v233
    %422 = vmatpush.msra.mxu0 %v225
    %423 = vmatpush.msra.mxu0 %v217
    %424 = vmatpush.msra.mxu0 %v209
    %425 = vmatpush.msra.mxu0 %v201
    %426 = vmatpush.msra.mxu0 %v193
    %427 = vmatpush.msra.mxu0 %v185
    %428 = vmatpush.msra.mxu0 %v177
    %429 = vmatpush.msra.mxu0 %v169
    %430 = vmatpush.msra.mxu0 %v161
    %431 = vmatpush.msra.mxu0 %v153
    %432 = vmatpush.msra.mxu0 %v145
    %433 = vmatpush.msra.mxu0 %v137
    %434 = vmatpush.msra.mxu0 %v129
    %435 = vmatmul.f32.gmra.mxu0 %v399
    %v436 = vpop.f32.mrf.mxu0
    %v437 = vadd.f32 %v403, %v436
    %438 = vmatmul.f32.gmra.mxu0 %v400
    %v439 = vpop.f32.mrf.mxu0
    %v440 = vadd.f32 %v403, %v439
    %441 = vdwg.mxu0
    %442 = vmatpush.msra.mxu0 %v250
    %443 = vmatpush.msra.mxu0 %v242
    %444 = vmatpush.msra.mxu0 %v234
    %445 = vmatpush.msra.mxu0 %v226
    %446 = vmatpush.msra.mxu0 %v218
    %447 = vmatpush.msra.mxu0 %v210
    %448 = vmatpush.msra.mxu0 %v202
    %449 = vmatpush.msra.mxu0 %v194
    %450 = vmatpush.msra.mxu0 %v186
    %451 = vmatpush.msra.mxu0 %v178
    %452 = vmatpush.msra.mxu0 %v170
    %453 = vmatpush.msra.mxu0 %v162
    %454 = vmatpush.msra.mxu0 %v154
    %455 = vmatpush.msra.mxu0 %v146
    %456 = vmatpush.msra.mxu0 %v138
    %457 = vmatpush.msra.mxu0 %v130
    %458 = vmatmul.f32.gmra.mxu0 %v399
    %v459 = vpop.f32.mrf.mxu0
    %v460 = vadd.f32 %v404, %v459
    %461 = vmatmul.f32.gmra.mxu0 %v400
    %v462 = vpop.f32.mrf.mxu0
    %v463 = vadd.f32 %v404, %v462
    %464 = vdwg.mxu0
    %465 = vmatpush.msra.mxu0 %v251
    %466 = vmatpush.msra.mxu0 %v243
    %467 = vmatpush.msra.mxu0 %v235
    %468 = vmatpush.msra.mxu0 %v227
    %469 = vmatpush.msra.mxu0 %v219
    %470 = vmatpush.msra.mxu0 %v211
    %471 = vmatpush.msra.mxu0 %v203
    %472 = vmatpush.msra.mxu0 %v195
    %473 = vmatpush.msra.mxu0 %v187
    %474 = vmatpush.msra.mxu0 %v179
    %475 = vmatpush.msra.mxu0 %v171
    %476 = vmatpush.msra.mxu0 %v163
    %477 = vmatpush.msra.mxu0 %v155
    %478 = vmatpush.msra.mxu0 %v147
    %479 = vmatpush.msra.mxu0 %v139
    %480 = vmatpush.msra.mxu0 %v131
    %481 = vmatmul.f32.gmra.mxu0 %v399
    %v482 = vpop.f32.mrf.mxu0
    %v483 = vadd.f32 %v405, %v482
    %484 = vmatmul.f32.gmra.mxu0 %v400
    %v485 = vpop.f32.mrf.mxu0
    %v486 = vadd.f32 %v405, %v485
    %487 = vdwg.mxu0
    %488 = vmatpush.msra.mxu0 %v252
    %489 = vmatpush.msra.mxu0 %v244
    %490 = vmatpush.msra.mxu0 %v236
    %491 = vmatpush.msra.mxu0 %v228
    %492 = vmatpush.msra.mxu0 %v220
    %493 = vmatpush.msra.mxu0 %v212
    %494 = vmatpush.msra.mxu0 %v204
    %495 = vmatpush.msra.mxu0 %v196
    %496 = vmatpush.msra.mxu0 %v188
    %497 = vmatpush.msra.mxu0 %v180
    %498 = vmatpush.msra.mxu0 %v172
    %499 = vmatpush.msra.mxu0 %v164
    %500 = vmatpush.msra.mxu0 %v156
    %501 = vmatpush.msra.mxu0 %v148
    %502 = vmatpush.msra.mxu0 %v140
    %503 = vmatpush.msra.mxu0 %v132
    %504 = vmatmul.f32.gmra.mxu0 %v399
    %v505 = vpop.f32.mrf.mxu0
    %v506 = vadd.f32 %v406, %v505
    %507 = vmatmul.f32.gmra.mxu0 %v400
    %v508 = vpop.f32.mrf.mxu0
    %v509 = vadd.f32 %v406, %v508
    %510 = vdwg.mxu0
    %511 = vmatpush.msra.mxu0 %v253
    %512 = vmatpush.msra.mxu0 %v245
    %513 = vmatpush.msra.mxu0 %v237
    %514 = vmatpush.msra.mxu0 %v229
    %515 = vmatpush.msra.mxu0 %v221
    %516 = vmatpush.msra.mxu0 %v213
    %517 = vmatpush.msra.mxu0 %v205
    %518 = vmatpush.msra.mxu0 %v197
    %519 = vmatpush.msra.mxu0 %v189
    %520 = vmatpush.msra.mxu0 %v181
    %521 = vmatpush.msra.mxu0 %v173
    %522 = vmatpush.msra.mxu0 %v165
    %523 = vmatpush.msra.mxu0 %v157
    %524 = vmatpush.msra.mxu0 %v149
    %525 = vmatpush.msra.mxu0 %v141
    %526 = vmatpush.msra.mxu0 %v133
    %527 = vmatmul.f32.gmra.mxu0 %v399
    %v528 = vpop.f32.mrf.mxu0
    %v529 = vadd.f32 %v407, %v528
    %530 = vmatmul.f32.gmra.mxu0 %v400
    %v531 = vpop.f32.mrf.mxu0
    %v532 = vadd.f32 %v407, %v531
    %533 = vdwg.mxu0
    %534 = vmatpush.msra.mxu0 %v254
    %535 = vmatpush.msra.mxu0 %v246
    %536 = vmatpush.msra.mxu0 %v238
    %537 = vmatpush.msra.mxu0 %v230
    %538 = vmatpush.msra.mxu0 %v222
    %539 = vmatpush.msra.mxu0 %v214
    %540 = vmatpush.msra.mxu0 %v206
    %541 = vmatpush.msra.mxu0 %v198
    %542 = vmatpush.msra.mxu0 %v190
    %543 = vmatpush.msra.mxu0 %v182
    %544 = vmatpush.msra.mxu0 %v174
    %545 = vmatpush.msra.mxu0 %v166
    %546 = vmatpush.msra.mxu0 %v158
    %547 = vmatpush.msra.mxu0 %v150
    %548 = vmatpush.msra.mxu0 %v142
    %549 = vmatpush.msra.mxu0 %v134
    %550 = vmatmul.f32.gmra.mxu0 %v399
    %v551 = vpop.f32.mrf.mxu0
    %v552 = vadd.f32 %v408, %v551
    %553 = vmatmul.f32.gmra.mxu0 %v400
    %v554 = vpop.f32.mrf.mxu0
    %v555 = vadd.f32 %v408, %v554
    %556 = vdwg.mxu0
    %557 = vmatpush.msra.mxu0 %v255
    %558 = vmatpush.msra.mxu0 %v247
    %559 = vmatpush.msra.mxu0 %v239
    %560 = vmatpush.msra.mxu0 %v231
    %561 = vmatpush.msra.mxu0 %v223
    %562 = vmatpush.msra.mxu0 %v215
    %563 = vmatpush.msra.mxu0 %v207
    %564 = vmatpush.msra.mxu0 %v199
    %565 = vmatpush.msra.mxu0 %v191
    %566 = vmatpush.msra.mxu0 %v183
    %567 = vmatpush.msra.mxu0 %v175
    %568 = vmatpush.msra.mxu0 %v167
    %569 = vmatpush.msra.mxu0 %v159
    %570 = vmatpush.msra.mxu0 %v151
    %571 = vmatpush.msra.mxu0 %v143
    %572 = vmatpush.msra.mxu0 %v135
    %573 = vmatmul.f32.gmra.mxu0 %v399
    %v574 = vpop.f32.mrf.mxu0
    %v575 = vadd.f32 %v409, %v574
    %576 = vmatmul.f32.gmra.mxu0 %v400
    %v577 = vpop.f32.mrf.mxu0
    %v578 = vadd.f32 %v409, %v577
    %579 = vdwg.mxu0
    %580 = vmatpush.msra.mxu0 %v256
    %581 = vmatpush.msra.mxu0 %v248
    %582 = vmatpush.msra.mxu0 %v240
    %583 = vmatpush.msra.mxu0 %v232
    %584 = vmatpush.msra.mxu0 %v224
    %585 = vmatpush.msra.mxu0 %v216
    %586 = vmatpush.msra.mxu0 %v208
    %587 = vmatpush.msra.mxu0 %v200
    %588 = vmatpush.msra.mxu0 %v192
    %589 = vmatpush.msra.mxu0 %v184
    %590 = vmatpush.msra.mxu0 %v176
    %591 = vmatpush.msra.mxu0 %v168
    %592 = vmatpush.msra.mxu0 %v160
    %593 = vmatpush.msra.mxu0 %v152
    %594 = vmatpush.msra.mxu0 %v144
    %595 = vmatpush.msra.mxu0 %v136
    %596 = vmatmul.f32.gmra.mxu0 %v399
    %v597 = vpop.f32.mrf.mxu0
    %v598 = vadd.f32 %v410, %v597
    %599 = vmatmul.f32.gmra.mxu0 %v400
    %v600 = vpop.f32.mrf.mxu0
    %v601 = vadd.f32 %v410, %v600
    %602 = vdwg.mxu0
    %603 = vst [vmem:[#allocation2] sm:$0xff] %v437
    %604 = vst [vmem:[#allocation2 + $0x8] sm:$0xff] %v460
    %605 = vst [vmem:[#allocation2 + $0x10] sm:$0xff] %v483
    %606 = vst [vmem:[#allocation2 + $0x18] sm:$0xff] %v506
    %607 = vst [vmem:[#allocation2 + $0x20] sm:$0xff] %v529
    %608 = vst [vmem:[#allocation2 + $0x28] sm:$0xff] %v552
    %609 = vst [vmem:[#allocation2 + $0x30] sm:$0xff] %v575
    %610 = vst [vmem:[#allocation2 + $0x38] sm:$0xff] %v598
    %611 = vst [vmem:[#allocation2 + $0x40] sm:$0xff] %v440
    %612 = vst [vmem:[#allocation2 + $0x48] sm:$0xff] %v463
    %613 = vst [vmem:[#allocation2 + $0x50] sm:$0xff] %v486
    %614 = vst [vmem:[#allocation2 + $0x58] sm:$0xff] %v509
    %615 = vst [vmem:[#allocation2 + $0x60] sm:$0xff] %v532
    %616 = vst [vmem:[#allocation2 + $0x68] sm:$0xff] %v555
    %617 = vst [vmem:[#allocation2 + $0x70] sm:$0xff] %v578
    %618 = vst [vmem:[#allocation2 + $0x78] sm:$0xff] %v601
    // Predicated region
    $region22: #{mlp_forward.1} parent=1 // pred_check
      _
    $region23: #{mlp_forward.1} parent=1 // pred_check_branch
      %620 = sbr.rel (0) target = $region25
    $region24: #{mlp_forward.1} parent=1 // pred_region
      %622 = vsyncadd [#allocation3], 0
      %s623 = sshll.u32 [#allocation2], 4
      %s624 = int_to_ptr.vmem [resolvable:$true] %s623
      %s625 = sshll.u32 %s5, 4
      %s626 = int_to_ptr.hbm [resolvable:$true] %s625
      %631 = dma.vmem_to_hbm [thread:$0]  %s624, 2048, %s626, [#allocation3], 1024, 1024, 64
    $region25: #{mlp_forward.1} parent=1 // pred_fallthru
      _
    // Predicated region
    $region26: #{mlp_forward.1} parent=1 // pred_check
      _
    $region27: #{mlp_forward.1} parent=1 // pred_check_branch
      %633 = sbr.rel (0) target = $region29
    $region28: #{mlp_forward.1} parent=1 // pred_region
      %635 = dma.done [#allocation3], 2048
    $region29: #{mlp_forward.1} parent=1 // pred_fallthru
      _
    %636 = vsyncpa [#allocation3], 1

</llo_original>
